<compile_context>
chip_gen: v6e
topology: v6e:2x2x1
jax: 0.10.0
libtpu: 0.0.40
codegen_flags: <defaults>
</compile_context>

<pallas_src>
import functools

import jax
import jax.numpy as jnp
from jax.experimental import pallas as pl
from jax.experimental.pallas import tpu as pltpu


def _softplus(x):
    # Numerically stable softplus, matches torch.nn.Softplus (beta=1).
    return jnp.maximum(x, 0.0) + jnp.log1p(jnp.exp(-jnp.abs(x)))


def kalman_kernel(obs_ref, ps_ref, w_ref, b_ref, out_ref, *,
                  obs_dim, state_dim, hidden_dim):
    in_dim = obs_dim + state_dim

    obs = obs_ref[...]        # (B, obs_dim)
    ps = ps_ref[...]          # (B, state_dim)
    W = w_ref[...]            # (in_dim + 2*hidden, W_COLS)
    Bv = b_ref[...]           # (3, W_COLS)

    # Static slices of the packed slabs (row boundaries are 8-aligned).
    w1 = W[0:in_dim, :hidden_dim]                              # (in_dim, hidden)
    w2 = W[in_dim:in_dim + hidden_dim, :hidden_dim]            # (hidden, hidden)
    wh = W[in_dim + hidden_dim:in_dim + 2 * hidden_dim, :]     # (hidden, W_COLS)
    b1 = Bv[0:1, :hidden_dim]
    b2 = Bv[1:2, :hidden_dim]
    bh = Bv[2:3, :]

    # Encoder layer 1: split-dot replaces the wrapper-side concat of [obs, prev_state].
    h = (jnp.dot(obs, w1[:obs_dim, :], preferred_element_type=jnp.float32)
         + jnp.dot(ps, w1[obs_dim:, :], preferred_element_type=jnp.float32)
         + b1)
    h = jnp.maximum(h, 0.0)

    # Encoder layer 2.
    h = jnp.dot(h, w2, preferred_element_type=jnp.float32) + b2
    h = jnp.maximum(h, 0.0)

    # Fused heads: one matmul produces [mean | cov_pre | gain | pad].
    heads = jnp.dot(h, wh, preferred_element_type=jnp.float32) + bh  # (B, W_COLS)

    # Softplus only on the cov columns [state_dim, 2*state_dim); everything else
    # passes through. One full-width lane-dense store.
    col = jax.lax.broadcasted_iota(jnp.int32, heads.shape, dimension=1)
    is_cov = (col >= state_dim) & (col < 2 * state_dim)
    out_ref[...] = jnp.where(is_cov, _softplus(heads), heads).astype(out_ref.dtype)


def init_params(key, obs_dim, state_dim, hidden_dim):
    """Deterministic synthetic parameters (PyTorch-Linear shapes, stored transposed)."""
    in_dim = obs_dim + state_dim
    keys = jax.random.split(key, 10)

    def lin(kw, kb, fan_in, fan_out):
        bound = 1.0 / jnp.sqrt(fan_in)
        w = jax.random.uniform(kw, (fan_in, fan_out), jnp.float32, -bound, bound)
        b = jax.random.uniform(kb, (1, fan_out), jnp.float32, -bound, bound)
        return w, b

    w1, b1 = lin(keys[0], keys[1], in_dim, hidden_dim)
    w2, b2 = lin(keys[2], keys[3], hidden_dim, hidden_dim)
    wm, bm = lin(keys[4], keys[5], hidden_dim, state_dim)
    wc, bc = lin(keys[6], keys[7], hidden_dim, state_dim)
    wg, bg = lin(keys[8], keys[9], hidden_dim, state_dim * obs_dim)
    return dict(w1=w1, b1=b1, w2=w2, b2=b2, wm=wm, bm=bm,
                wc=wc, bc=bc, wg=wg, bg=bg)


def pack_params(params, obs_dim, state_dim, hidden_dim):
    """Pack all weights into one slab and all biases into one slab (done once)."""
    head_out = 2 * state_dim + state_dim * obs_dim
    w_cols = max(hidden_dim, head_out)

    def pad_cols(a):
        return jnp.pad(a, ((0, 0), (0, w_cols - a.shape[1])))

    wh = jnp.concatenate([params["wm"], params["wc"], params["wg"]], axis=1)
    bh = jnp.concatenate([params["bm"], params["bc"], params["bg"]], axis=1)

    w_slab = jnp.concatenate(
        [pad_cols(params["w1"]), pad_cols(params["w2"]), pad_cols(wh)], axis=0)
    b_slab = jnp.concatenate(
        [pad_cols(params["b1"]), pad_cols(params["b2"]), pad_cols(bh)], axis=0)
    return w_slab, b_slab


def kalman_filter_net_forward(obs, prev_state, w_slab, b_slab,
                              obs_dim, state_dim, hidden_dim):
    """JAX wrapper: single pallas_call + static slices of the fused output slab."""
    B = obs.shape[0]
    head_out = 2 * state_dim + state_dim * obs_dim
    w_cols = w_slab.shape[1]

    vmem = pl.BlockSpec(memory_space=pltpu.MemorySpace.VMEM)
    kernel = functools.partial(kalman_kernel, obs_dim=obs_dim,
                               state_dim=state_dim, hidden_dim=hidden_dim)

    out = pl.pallas_call(
        kernel,
        out_shape=jax.ShapeDtypeStruct((B, w_cols), jnp.float32),
        in_specs=[vmem, vmem, vmem, vmem],
        out_specs=vmem,
    )(obs, prev_state, w_slab, b_slab)

    mean = out[:, :state_dim]
    cov_diag = out[:, state_dim:2 * state_dim]
    gain = out[:, 2 * state_dim:head_out].reshape(B, state_dim, obs_dim)
    return mean, cov_diag, gain


def reference_forward(obs, prev_state, params, state_dim, obs_dim):
    """Pure-JAX reference (unpacked params) for correctness checking."""
    x = jnp.concatenate([obs, prev_state], axis=1)
    h = jnp.maximum(x @ params["w1"] + params["b1"], 0.0)
    h = jnp.maximum(h @ params["w2"] + params["b2"], 0.0)
    mean = h @ params["wm"] + params["bm"]
    cov = jax.nn.softplus(h @ params["wc"] + params["bc"])
    gain = (h @ params["wg"] + params["bg"]).reshape(-1, state_dim, obs_dim)
    return mean, cov, gain


if __name__ == "__main__":
    obs_dim, state_dim, hidden_dim = 4, 4, 32
    batch = 8

    key = jax.random.PRNGKey(0)
    k_obs, k_state, k_params = jax.random.split(key, 3)

    obs = jax.random.normal(k_obs, (batch, obs_dim), jnp.float32)
    prev_state = jax.random.normal(k_state, (batch, state_dim), jnp.float32)
    params = init_params(k_params, obs_dim, state_dim, hidden_dim)

    # Pack once (offline) into two VMEM-friendly slabs.
    w_slab, b_slab = pack_params(params, obs_dim, state_dim, hidden_dim)

    mean, cov_diag, gain = kalman_filter_net_forward(
        obs, prev_state, w_slab, b_slab, obs_dim, state_dim, hidden_dim)
    jax.block_until_ready((mean, cov_diag, gain))

    # Correctness check against pure-JAX reference (unpacked params).
    ref_mean, ref_cov, ref_gain = reference_forward(
        obs, prev_state, params, state_dim, obs_dim)
    assert mean.shape == (batch, state_dim)
    assert cov_diag.shape == (batch, state_dim)
    assert gain.shape == (batch, state_dim, obs_dim)
    assert jnp.allclose(mean, ref_mean, atol=1e-5, rtol=1e-5)
    assert jnp.allclose(cov_diag, ref_cov, atol=1e-5, rtol=1e-5)
    assert jnp.allclose(gain, ref_gain, atol=1e-5, rtol=1e-5)
    assert bool(jnp.all(cov_diag > 0.0))  # softplus output is strictly positive

    print("KERNEL_OK")
</pallas_src>

<mosaic_0001>
module attributes {stable_mosaic.version = 11 : i64} {
  func.func @kalman_kernel(%arg0: memref<8x4xf32, #tpu.memory_space<vmem>>, %arg1: memref<8x4xf32, #tpu.memory_space<vmem>>, %arg2: memref<72x32xf32, #tpu.memory_space<vmem>>, %arg3: memref<3x32xf32, #tpu.memory_space<vmem>>, %arg4: memref<8x32xf32, #tpu.memory_space<vmem>>) attributes {dimension_semantics = [], scalar_prefetch = 0 : i64, scratch_operands = 0 : i64, tpu.core_type = #tpu.core_type<tc>} {
    %c0 = arith.constant 0 : index
    %c0_0 = arith.constant 0 : index
    %0 = vector.load %arg0[%c0, %c0_0] : memref<8x4xf32, #tpu.memory_space<vmem>>, vector<8x4xf32>
    %c0_1 = arith.constant 0 : index
    %c0_2 = arith.constant 0 : index
    %1 = vector.load %arg1[%c0_1, %c0_2] : memref<8x4xf32, #tpu.memory_space<vmem>>, vector<8x4xf32>
    %c0_3 = arith.constant 0 : index
    %c0_4 = arith.constant 0 : index
    %2 = vector.load %arg2[%c0_3, %c0_4] : memref<72x32xf32, #tpu.memory_space<vmem>>, vector<72x32xf32>
    %c0_5 = arith.constant 0 : index
    %c0_6 = arith.constant 0 : index
    %3 = vector.load %arg3[%c0_5, %c0_6] : memref<3x32xf32, #tpu.memory_space<vmem>>, vector<3x32xf32>
    %4 = vector.extract_strided_slice %2 {offsets = [0, 0], sizes = [8, 32], strides = [1, 1]} : vector<72x32xf32> to vector<8x32xf32>
    %5 = vector.extract_strided_slice %2 {offsets = [8, 0], sizes = [32, 32], strides = [1, 1]} : vector<72x32xf32> to vector<32x32xf32>
    %6 = vector.extract_strided_slice %2 {offsets = [40, 0], sizes = [32, 32], strides = [1, 1]} : vector<72x32xf32> to vector<32x32xf32>
    %7 = vector.extract_strided_slice %3 {offsets = [0, 0], sizes = [1, 32], strides = [1, 1]} : vector<3x32xf32> to vector<1x32xf32>
    %8 = vector.extract_strided_slice %3 {offsets = [1, 0], sizes = [1, 32], strides = [1, 1]} : vector<3x32xf32> to vector<1x32xf32>
    %9 = vector.extract_strided_slice %3 {offsets = [2, 0], sizes = [1, 32], strides = [1, 1]} : vector<3x32xf32> to vector<1x32xf32>
    %10 = vector.extract_strided_slice %4 {offsets = [0, 0], sizes = [4, 32], strides = [1, 1]} : vector<8x32xf32> to vector<4x32xf32>
    %cst = arith.constant dense<0.000000e+00> : vector<8x32xf32>
    %11 = tpu.matmul %0, %10, %cst {dimension_numbers = #tpu.dot_dimension_numbers<[1], [0], [0], [1], [0, 0, 1, 1], [], []>} : vector<8x4xf32>, vector<4x32xf32>, vector<8x32xf32> -> vector<8x32xf32>
    %12 = vector.extract_strided_slice %4 {offsets = [4, 0], sizes = [4, 32], strides = [1, 1]} : vector<8x32xf32> to vector<4x32xf32>
    %cst_7 = arith.constant dense<0.000000e+00> : vector<8x32xf32>
    %13 = tpu.matmul %1, %12, %cst_7 {dimension_numbers = #tpu.dot_dimension_numbers<[1], [0], [0], [1], [0, 0, 1, 1], [], []>} : vector<8x4xf32>, vector<4x32xf32>, vector<8x32xf32> -> vector<8x32xf32>
    %14 = arith.addf %11, %13 : vector<8x32xf32>
    %15 = vector.broadcast %7 : vector<1x32xf32> to vector<8x32xf32>
    %16 = arith.addf %14, %15 : vector<8x32xf32>
    %cst_8 = arith.constant 0.000000e+00 : f32
    %17 = vector.broadcast %cst_8 : f32 to vector<8x32xf32>
    %18 = arith.maximumf %16, %17 : vector<8x32xf32>
    %cst_9 = arith.constant dense<0.000000e+00> : vector<8x32xf32>
    %19 = tpu.matmul %18, %5, %cst_9 {dimension_numbers = #tpu.dot_dimension_numbers<[1], [0], [0], [1], [0, 0, 1, 1], [], []>} : vector<8x32xf32>, vector<32x32xf32>, vector<8x32xf32> -> vector<8x32xf32>
    %20 = vector.broadcast %8 : vector<1x32xf32> to vector<8x32xf32>
    %21 = arith.addf %19, %20 : vector<8x32xf32>
    %cst_10 = arith.constant 0.000000e+00 : f32
    %22 = vector.broadcast %cst_10 : f32 to vector<8x32xf32>
    %23 = arith.maximumf %21, %22 : vector<8x32xf32>
    %cst_11 = arith.constant dense<0.000000e+00> : vector<8x32xf32>
    %24 = tpu.matmul %23, %6, %cst_11 {dimension_numbers = #tpu.dot_dimension_numbers<[1], [0], [0], [1], [0, 0, 1, 1], [], []>} : vector<8x32xf32>, vector<32x32xf32>, vector<8x32xf32> -> vector<8x32xf32>
    %25 = vector.broadcast %9 : vector<1x32xf32> to vector<8x32xf32>
    %26 = arith.addf %24, %25 : vector<8x32xf32>
    %27 = tpu.iota {dimensions = array<i32: 1>} : vector<8x32xi32>
    %c4_i32 = arith.constant 4 : i32
    %28 = vector.broadcast %c4_i32 : i32 to vector<8x32xi32>
    %29 = arith.cmpi sge, %27, %28 : vector<8x32xi32>
    %c8_i32 = arith.constant 8 : i32
    %30 = vector.broadcast %c8_i32 : i32 to vector<8x32xi32>
    %31 = arith.cmpi slt, %27, %30 : vector<8x32xi32>
    %32 = arith.andi %29, %31 : vector<8x32xi1>
    %cst_12 = arith.constant 0.000000e+00 : f32
    %33 = vector.broadcast %cst_12 : f32 to vector<8x32xf32>
    %34 = arith.maximumf %26, %33 : vector<8x32xf32>
    %35 = math.absf %26 : vector<8x32xf32>
    %cst_13 = arith.constant 0.000000e+00 : f32
    %36 = vector.broadcast %cst_13 : f32 to vector<8x32xf32>
    %37 = arith.subf %36, %35 : vector<8x32xf32>
    %38 = math.exp %37 : vector<8x32xf32>
    %39 = math.log1p %38 : vector<8x32xf32>
    %40 = arith.addf %34, %39 : vector<8x32xf32>
    %41 = arith.select %32, %40, %26 : vector<8x32xi1>, vector<8x32xf32>
    %c0_14 = arith.constant 0 : index
    %c0_15 = arith.constant 0 : index
    %42 = vector.load %arg4[%c0_14, %c0_15] : memref<8x32xf32, #tpu.memory_space<vmem>>, vector<8x32xf32>
    tpu.vector_store %arg4[%c0_14, %c0_15], %41 {strides = array<i32>} : memref<8x32xf32, #tpu.memory_space<vmem>>, vector<8x32xf32>,
    return
  }
}

</mosaic_0001>

<llo_original>
// kernel: tpu_custom_call.1
$region0: #{tpu_custom_call.1}
  #allocation0 [shape = 'u32[]', space=smem, size = 0x4, offset = 0x4, fixed_abs, tag = 'smem constant byte address 0x4 - core index']
  #allocation1 [shape = 'u32[144,128]{1,0:T(1,128)}', space=vmem, size = 0x12000, scoped, tag = 'internal scratch']
  %s0 = inlined_call_operand.vmem [shape: f32[8,4], index: 0, kind: input, shape index: {}]
  %s1 = inlined_call_operand.vmem [shape: f32[8,4], index: 1, kind: input, shape index: {}]
  %s2 = inlined_call_operand.vmem [shape: f32[72,32], index: 2, kind: input, shape index: {}]
  %s3 = inlined_call_operand.vmem [shape: f32[3,32], index: 3, kind: input, shape index: {}]
  %s4 = inlined_call_operand.hbm [shape: f32[8,32], index: 4, kind: output, shape index: {}]
  %s5 = sld [smem:[#allocation0]]
  $region26: #{tpu_custom_call.1} parent=0
    _
  %s7 = ssub.s32 1, %s5
  %s8 = scalar_select 0, %s7, %s5
  $region1: #{tpu_custom_call.1} parent=0
    #allocation2 [shape = 'u8[4096]{0}', space=vmem, size = 0x1000, scoped, tag = 'output window, operand 0, single buffered']
    #allocation3 [shape = 's32[1]{0}', space=sflag, size = 0x4, scoped, tag = 'scoped memory for tpu_custom_call.1']
    %9 = vsyncpa [#allocation3], 0
    // Predicated region
    $region2: #{tpu_custom_call.1} parent=1 // pred_check
      _
    $region3: #{tpu_custom_call.1} parent=1 // pred_check_branch
      %11 = sbr.rel (0) target = $region5
    $region4: #{tpu_custom_call.1} parent=1 // pred_region
      _
    $region5: #{tpu_custom_call.1} parent=1 // pred_fallthru
      _
    // Predicated region
    $region6: #{tpu_custom_call.1} parent=1 // pred_check
      _
    $region7: #{tpu_custom_call.1} parent=1 // pred_check_branch
      %13 = sbr.rel (0) target = $region9
    $region8: #{tpu_custom_call.1} parent=1 // pred_region
      _
    $region9: #{tpu_custom_call.1} parent=1 // pred_fallthru
      _
    // Predicated region
    $region10: #{tpu_custom_call.1} parent=1 // pred_check
      _
    $region11: #{tpu_custom_call.1} parent=1 // pred_check_branch
      %15 = sbr.rel (0) target = $region13
    $region12: #{tpu_custom_call.1} parent=1 // pred_region
      _
    $region13: #{tpu_custom_call.1} parent=1 // pred_fallthru
      _
    // Predicated region
    $region14: #{tpu_custom_call.1} parent=1 // pred_check
      _
    $region15: #{tpu_custom_call.1} parent=1 // pred_check_branch
      %17 = sbr.rel (0) target = $region17
    $region16: #{tpu_custom_call.1} parent=1 // pred_region
      _
    $region17: #{tpu_custom_call.1} parent=1 // pred_fallthru
      _
    %v18 = vld [vmem:[%s0] sm:$0xff]
    %v19 = vld [vmem:[%s1] sm:$0xff]
    %v20 = vld [vmem:[%s2] sm:$0xff]
    %v21 = vld [vmem:[%s2 + $0x8] sm:$0xff]
    %v22 = vld [vmem:[%s2 + $0x10] sm:$0xff]
    %v23 = vld [vmem:[%s2 + $0x18] sm:$0xff]
    %v24 = vld [vmem:[%s2 + $0x20] sm:$0xff]
    %v25 = vld [vmem:[%s2 + $0x28] sm:$0xff]
    %v26 = vld [vmem:[%s2 + $0x30] sm:$0xff]
    %v27 = vld [vmem:[%s2 + $0x38] sm:$0xff]
    %v28 = vld [vmem:[%s2 + $0x40] sm:$0xff]
    %v29 = vld [vmem:[%s3] sm:$0x7]
    %v31 = vrot.slane %v20, 4
    %vm32 = vcmask 31744
    %v34 = vsel %vm32, %v19, 0
    %vm36 = vcmask 1043456
    %v37 = vsel %vm36, %v31, 0
    %39 = vmatprep.subr.mxu0 0.0
    %40 = vmatpush1.msra.mxu0 0.0
    %41 = vmatprep.subr.mxu0 0.0
    %42 = vmatpush1.msra.mxu0 0.0
    %43 = vmatprep.subr.mxu0 0.0
    %44 = vmatpush1.msra.mxu0 0.0
    %45 = vmatprep.subr.mxu0 0.0
    %46 = vmatpush1.msra.mxu0 0.0
    %47 = vmatprep.subr.mxu0 0.0
    %48 = vmatpush1.msra.mxu0 0.0
    %49 = vmatprep.subr.mxu0 0.0
    %50 = vmatpush1.msra.mxu0 0.0
    %51 = vmatprep.subr.mxu0 0.0
    %52 = vmatpush1.msra.mxu0 0.0
    %53 = vmatprep.subr.mxu0 0.0
    %54 = vmatpush1.msra.mxu0 0.0
    %55 = vmatprep.subr.mxu0 0.0
    %56 = vmatpush1.msra.mxu0 0.0
    %57 = vmatprep.subr.mxu0 0.0
    %58 = vmatpush1.msra.mxu0 0.0
    %59 = vmatprep.subr.mxu0 0.0
    %60 = vmatpush1.msra.mxu0 0.0
    %61 = vmatprep.subr.mxu0 0.0
    %62 = vmatpush1.msra.mxu0 0.0
    %63 = vmatprep.subr.mxu0 0.0
    %64 = vmatpush1.msra.mxu0 0.0
    %65 = vmatprep.subr.mxu0 0.0
    %66 = vmatpush1.msra.mxu0 0.0
    %67 = vmatprep.subr.mxu0 0.0
    %68 = vmatpush1.msra.mxu0 0.0
    %69 = vmatprep.subr.mxu0 0.0
    %70 = vmatpush1.msra.mxu0 %v37
    %71 = vmatprep.subr.mxu0 0.0
    %72 = vmatpush2.msra.mxu0 0.0
    %73 = vmatprep.subr.mxu0 0.0
    %74 = vmatpush2.msra.mxu0 0.0
    %75 = vmatprep.subr.mxu0 0.0
    %76 = vmatpush2.msra.mxu0 0.0
    %77 = vmatprep.subr.mxu0 0.0
    %78 = vmatpush2.msra.mxu0 0.0
    %79 = vmatprep.subr.mxu0 0.0
    %80 = vmatpush2.msra.mxu0 0.0
    %81 = vmatprep.subr.mxu0 0.0
    %82 = vmatpush2.msra.mxu0 0.0
    %83 = vmatprep.subr.mxu0 0.0
    %84 = vmatpush2.msra.mxu0 0.0
    %85 = vmatprep.subr.mxu0 0.0
    %86 = vmatpush2.msra.mxu0 0.0
    %87 = vmatprep.subr.mxu0 0.0
    %88 = vmatpush2.msra.mxu0 0.0
    %89 = vmatprep.subr.mxu0 0.0
    %90 = vmatpush2.msra.mxu0 0.0
    %91 = vmatprep.subr.mxu0 0.0
    %92 = vmatpush2.msra.mxu0 0.0
    %93 = vmatprep.subr.mxu0 0.0
    %94 = vmatpush2.msra.mxu0 0.0
    %95 = vmatprep.subr.mxu0 0.0
    %96 = vmatpush2.msra.mxu0 0.0
    %97 = vmatprep.subr.mxu0 0.0
    %98 = vmatpush2.msra.mxu0 0.0
    %99 = vmatprep.subr.mxu0 0.0
    %100 = vmatpush2.msra.mxu0 0.0
    %101 = vmatprep.subr.mxu0 0.0
    %102 = vmatpush2.msra.mxu0 0.0
    %103 = vmatprep.mubr.f32.mxu0 0.0
    %104 = vmatmul.mubr.f32.gmra.mxu0 %v34
    %v105 = vpop.f32.mrf.mxu0
    %v106 = vadd.f32 0.0, %v105
    %v107 = vpop.f32.mrf.mxu0
    %108 = vdwg.mxu0
    %v110 = vsel %vm32, %v18, 0
    %v112 = vsel %vm36, %v20, 0
    %114 = vmatprep.subr.mxu0 0.0
    %115 = vmatpush1.msra.mxu0 0.0
    %116 = vmatprep.subr.mxu0 0.0
    %117 = vmatpush1.msra.mxu0 0.0
    %118 = vmatprep.subr.mxu0 0.0
    %119 = vmatpush1.msra.mxu0 0.0
    %120 = vmatprep.subr.mxu0 0.0
    %121 = vmatpush1.msra.mxu0 0.0
    %122 = vmatprep.subr.mxu0 0.0
    %123 = vmatpush1.msra.mxu0 0.0
    %124 = vmatprep.subr.mxu0 0.0
    %125 = vmatpush1.msra.mxu0 0.0
    %126 = vmatprep.subr.mxu0 0.0
    %127 = vmatpush1.msra.mxu0 0.0
    %128 = vmatprep.subr.mxu0 0.0
    %129 = vmatpush1.msra.mxu0 0.0
    %130 = vmatprep.subr.mxu0 0.0
    %131 = vmatpush1.msra.mxu0 0.0
    %132 = vmatprep.subr.mxu0 0.0
    %133 = vmatpush1.msra.mxu0 0.0
    %134 = vmatprep.subr.mxu0 0.0
    %135 = vmatpush1.msra.mxu0 0.0
    %136 = vmatprep.subr.mxu0 0.0
    %137 = vmatpush1.msra.mxu0 0.0
    %138 = vmatprep.subr.mxu0 0.0
    %139 = vmatpush1.msra.mxu0 0.0
    %140 = vmatprep.subr.mxu0 0.0
    %141 = vmatpush1.msra.mxu0 0.0
    %142 = vmatprep.subr.mxu0 0.0
    %143 = vmatpush1.msra.mxu0 0.0
    %144 = vmatprep.subr.mxu0 0.0
    %145 = vmatpush1.msra.mxu0 %v112
    %146 = vmatprep.subr.mxu0 0.0
    %147 = vmatpush2.msra.mxu0 0.0
    %148 = vmatprep.subr.mxu0 0.0
    %149 = vmatpush2.msra.mxu0 0.0
    %150 = vmatprep.subr.mxu0 0.0
    %151 = vmatpush2.msra.mxu0 0.0
    %152 = vmatprep.subr.mxu0 0.0
    %153 = vmatpush2.msra.mxu0 0.0
    %154 = vmatprep.subr.mxu0 0.0
    %155 = vmatpush2.msra.mxu0 0.0
    %156 = vmatprep.subr.mxu0 0.0
    %157 = vmatpush2.msra.mxu0 0.0
    %158 = vmatprep.subr.mxu0 0.0
    %159 = vmatpush2.msra.mxu0 0.0
    %160 = vmatprep.subr.mxu0 0.0
    %161 = vmatpush2.msra.mxu0 0.0
    %162 = vmatprep.subr.mxu0 0.0
    %163 = vmatpush2.msra.mxu0 0.0
    %164 = vmatprep.subr.mxu0 0.0
    %165 = vmatpush2.msra.mxu0 0.0
    %166 = vmatprep.subr.mxu0 0.0
    %167 = vmatpush2.msra.mxu0 0.0
    %168 = vmatprep.subr.mxu0 0.0
    %169 = vmatpush2.msra.mxu0 0.0
    %170 = vmatprep.subr.mxu0 0.0
    %171 = vmatpush2.msra.mxu0 0.0
    %172 = vmatprep.subr.mxu0 0.0
    %173 = vmatpush2.msra.mxu0 0.0
    %174 = vmatprep.subr.mxu0 0.0
    %175 = vmatpush2.msra.mxu0 0.0
    %176 = vmatprep.subr.mxu0 0.0
    %177 = vmatpush2.msra.mxu0 0.0
    %178 = vmatprep.mubr.f32.mxu0 0.0
    %179 = vmatmul.mubr.f32.gmra.mxu0 %v110
    %v180 = vpop.f32.mrf.mxu0
    %v181 = vadd.f32 %v106, %v180
    %v182 = vpop.f32.mrf.mxu0
    %183 = vdwg.mxu0
    %v184 = vlaneseq
    %v185 = vshrl.u32 %v184, 7
    %v186 = vsub.s32 0, %v185
    %v187 = vrot.slane %v29, %v186
    %v188 = vadd.f32 %v181, %v187
    %v189 = vmax.f32 %v188, 0.0
    %v190 = vlaneseq
    %v191 = vshrl.u32 %v190, 7
    %v192 = vsub.s32 1, %v191
    %v193 = vrot.slane %v29, %v192
    %vm194 = vcmask 261120
    %v196 = vsel %vm194, %v189, 0
    %198 = vmatprep.subr.mxu0 0.0
    %199 = vmatpush1.msra.mxu0 0.0
    %200 = vmatprep.subr.mxu0 0.0
    %201 = vmatpush1.msra.mxu0 0.0
    %202 = vmatprep.subr.mxu0 0.0
    %203 = vmatpush1.msra.mxu0 0.0
    %204 = vmatprep.subr.mxu0 0.0
    %205 = vmatpush1.msra.mxu0 0.0
    %206 = vmatprep.subr.mxu0 0.0
    %207 = vmatpush1.msra.mxu0 0.0
    %208 = vmatprep.subr.mxu0 0.0
    %209 = vmatpush1.msra.mxu0 0.0
    %210 = vmatprep.subr.mxu0 0.0
    %211 = vmatpush1.msra.mxu0 0.0
    %212 = vmatprep.subr.mxu0 0.0
    %213 = vmatpush1.msra.mxu0 0.0
    %214 = vmatprep.subr.mxu0 0.0
    %215 = vmatpush1.msra.mxu0 0.0
    %216 = vmatprep.subr.mxu0 0.0
    %217 = vmatpush1.msra.mxu0 0.0
    %218 = vmatprep.subr.mxu0 0.0
    %219 = vmatpush1.msra.mxu0 0.0
    %220 = vmatprep.subr.mxu0 0.0
    %221 = vmatpush1.msra.mxu0 0.0
    %222 = vmatprep.subr.mxu0 0.0
    %223 = vmatpush1.msra.mxu0 %v24
    %224 = vmatprep.subr.mxu0 0.0
    %225 = vmatpush1.msra.mxu0 %v23
    %226 = vmatprep.subr.mxu0 0.0
    %227 = vmatpush1.msra.mxu0 %v22
    %228 = vmatprep.subr.mxu0 0.0
    %229 = vmatpush1.msra.mxu0 %v21
    %230 = vmatprep.subr.mxu0 0.0
    %231 = vmatpush2.msra.mxu0 0.0
    %232 = vmatprep.subr.mxu0 0.0
    %233 = vmatpush2.msra.mxu0 0.0
    %234 = vmatprep.subr.mxu0 0.0
    %235 = vmatpush2.msra.mxu0 0.0
    %236 = vmatprep.subr.mxu0 0.0
    %237 = vmatpush2.msra.mxu0 0.0
    %238 = vmatprep.subr.mxu0 0.0
    %239 = vmatpush2.msra.mxu0 0.0
    %240 = vmatprep.subr.mxu0 0.0
    %241 = vmatpush2.msra.mxu0 0.0
    %242 = vmatprep.subr.mxu0 0.0
    %243 = vmatpush2.msra.mxu0 0.0
    %244 = vmatprep.subr.mxu0 0.0
    %245 = vmatpush2.msra.mxu0 0.0
    %246 = vmatprep.subr.mxu0 0.0
    %247 = vmatpush2.msra.mxu0 0.0
    %248 = vmatprep.subr.mxu0 0.0
    %249 = vmatpush2.msra.mxu0 0.0
    %250 = vmatprep.subr.mxu0 0.0
    %251 = vmatpush2.msra.mxu0 0.0
    %252 = vmatprep.subr.mxu0 0.0
    %253 = vmatpush2.msra.mxu0 0.0
    %254 = vmatprep.subr.mxu0 0.0
    %255 = vmatpush2.msra.mxu0 0.0
    %256 = vmatprep.subr.mxu0 0.0
    %257 = vmatpush2.msra.mxu0 0.0
    %258 = vmatprep.subr.mxu0 0.0
    %259 = vmatpush2.msra.mxu0 0.0
    %260 = vmatprep.subr.mxu0 0.0
    %261 = vmatpush2.msra.mxu0 0.0
    %262 = vmatprep.mubr.f32.mxu0 0.0
    %263 = vmatmul.mubr.f32.gmra.mxu0 %v196
    %v264 = vpop.f32.mrf.mxu0
    %v265 = vadd.f32 %v193, %v264
    %v266 = vpop.f32.mrf.mxu0
    %267 = vdwg.mxu0
    %v268 = vmax.f32 %v265, 0.0
    %v269 = vlaneseq
    %v270 = vshrl.u32 %v269, 7
    %v271 = vsub.s32 2, %v270
    %v272 = vrot.slane %v29, %v271
    %v274 = vsel %vm194, %v268, 0
    %276 = vmatprep.subr.mxu0 0.0
    %277 = vmatpush1.msra.mxu0 0.0
    %278 = vmatprep.subr.mxu0 0.0
    %279 = vmatpush1.msra.mxu0 0.0
    %280 = vmatprep.subr.mxu0 0.0
    %281 = vmatpush1.msra.mxu0 0.0
    %282 = vmatprep.subr.mxu0 0.0
    %283 = vmatpush1.msra.mxu0 0.0
    %284 = vmatprep.subr.mxu0 0.0
    %285 = vmatpush1.msra.mxu0 0.0
    %286 = vmatprep.subr.mxu0 0.0
    %287 = vmatpush1.msra.mxu0 0.0
    %288 = vmatprep.subr.mxu0 0.0
    %289 = vmatpush1.msra.mxu0 0.0
    %290 = vmatprep.subr.mxu0 0.0
    %291 = vmatpush1.msra.mxu0 0.0
    %292 = vmatprep.subr.mxu0 0.0
    %293 = vmatpush1.msra.mxu0 0.0
    %294 = vmatprep.subr.mxu0 0.0
    %295 = vmatpush1.msra.mxu0 0.0
    %296 = vmatprep.subr.mxu0 0.0
    %297 = vmatpush1.msra.mxu0 0.0
    %298 = vmatprep.subr.mxu0 0.0
    %299 = vmatpush1.msra.mxu0 0.0
    %300 = vmatprep.subr.mxu0 0.0
    %301 = vmatpush1.msra.mxu0 %v28
    %302 = vmatprep.subr.mxu0 0.0
    %303 = vmatpush1.msra.mxu0 %v27
    %304 = vmatprep.subr.mxu0 0.0
    %305 = vmatpush1.msra.mxu0 %v26
    %306 = vmatprep.subr.mxu0 0.0
    %307 = vmatpush1.msra.mxu0 %v25
    %308 = vmatprep.subr.mxu0 0.0
    %309 = vmatpush2.msra.mxu0 0.0
    %310 = vmatprep.subr.mxu0 0.0
    %311 = vmatpush2.msra.mxu0 0.0
    %312 = vmatprep.subr.mxu0 0.0
    %313 = vmatpush2.msra.mxu0 0.0
    %314 = vmatprep.subr.mxu0 0.0
    %315 = vmatpush2.msra.mxu0 0.0
    %316 = vmatprep.subr.mxu0 0.0
    %317 = vmatpush2.msra.mxu0 0.0
    %318 = vmatprep.subr.mxu0 0.0
    %319 = vmatpush2.msra.mxu0 0.0
    %320 = vmatprep.subr.mxu0 0.0
    %321 = vmatpush2.msra.mxu0 0.0
    %322 = vmatprep.subr.mxu0 0.0
    %323 = vmatpush2.msra.mxu0 0.0
    %324 = vmatprep.subr.mxu0 0.0
    %325 = vmatpush2.msra.mxu0 0.0
    %326 = vmatprep.subr.mxu0 0.0
    %327 = vmatpush2.msra.mxu0 0.0
    %328 = vmatprep.subr.mxu0 0.0
    %329 = vmatpush2.msra.mxu0 0.0
    %330 = vmatprep.subr.mxu0 0.0
    %331 = vmatpush2.msra.mxu0 0.0
    %332 = vmatprep.subr.mxu0 0.0
    %333 = vmatpush2.msra.mxu0 0.0
    %334 = vmatprep.subr.mxu0 0.0
    %335 = vmatpush2.msra.mxu0 0.0
    %336 = vmatprep.subr.mxu0 0.0
    %337 = vmatpush2.msra.mxu0 0.0
    %338 = vmatprep.subr.mxu0 0.0
    %339 = vmatpush2.msra.mxu0 0.0
    %340 = vmatprep.mubr.f32.mxu0 0.0
    %341 = vmatmul.mubr.f32.gmra.mxu0 %v274
    %v342 = vpop.f32.mrf.mxu0
    %v343 = vadd.f32 %v272, %v342
    %v344 = vpop.f32.mrf.mxu0
    %345 = vdwg.mxu0
    %v346 = vlaneseq
    %v347 = vand.u32 %v346, 127
    %vm348 = vcmp.ge.s32.totalorder %v347, 4
    %vm349 = vcmp.lt.s32.totalorder %v347, 8
    %vm350 = vmand %vm348, %vm349
    %v351 = vmax.f32 %v343, 0.0
    %v352 = vand.u32 2147483647, %v343
    %v353 = vsub.f32 0.0, %v352
    %v354 = vmul.f32 %v353, 1.442695
    %v355 = vpow.pop %v354
    %v356 = vadd.f32 %v355, 1.0
    %v357 = vlog2.pop %v356
    %v358 = vmul.f32 %v357, 0.6931472
    %v359 = vmul.f32 -0.5, %v355
    %v360 = vadd.f32 %v359, 1.0
    %v361 = vmul.f32 %v360, %v355
    %v362 = vand.u32 2147483647, %v355
    %vm363 = vcmp.lt.f32.partialorder %v362, 0.0004427343
    %v364 = vsel %vm363, %v361, %v358
    %v365 = vadd.f32 %v351, %v364
    %v366 = vsel %vm350, %v365, %v343
    %367 = vst.msk [vmem:[#allocation2] sm:$0xff] %vm194, %v366
    // Predicated region
    $region18: #{tpu_custom_call.1} parent=1 // pred_check
      _
    $region19: #{tpu_custom_call.1} parent=1 // pred_check_branch
      %369 = sbr.rel (0) target = $region21
    $region20: #{tpu_custom_call.1} parent=1 // pred_region
      %s371 = ssub.s32 128, 128
      %372 = vsyncadd [#allocation3], %s371
      %s374 = sshll.u32 [#allocation2], 4
      %s375 = int_to_ptr.vmem [resolvable:$true] %s374
      %377 = dma.vmem_to_hbm [thread:$0]  %s375, 128, %s4, [#allocation3]
    $region21: #{tpu_custom_call.1} parent=1 // pred_fallthru
      _
    // Predicated region
    $region22: #{tpu_custom_call.1} parent=1 // pred_check
      _
    $region23: #{tpu_custom_call.1} parent=1 // pred_check_branch
      %379 = sbr.rel (0) target = $region25
    $region24: #{tpu_custom_call.1} parent=1 // pred_region
      %380 = dma.done [#allocation3], 128
    $region25: #{tpu_custom_call.1} parent=1 // pred_fallthru
      _
    %381 = vsyncpa [#allocation3], 1

</llo_original>
